<compile_context>
chip_gen: v6e
topology: v6e:2x2x1
jax: 0.10.0
libtpu: 0.0.40
codegen_flags: <defaults>
</compile_context>

<pallas_src>
import jax
import jax.numpy as jnp
from jax.experimental import pallas as pl
from jax.experimental.pallas import tpu as pltpu


def dyconv_level_kernel(gate_ref, x_ref, w1_ref, b1_ref, o_ref):
    """One (batch, pixel-tile) grid step of the fused 1x1-conv + gate + ReLU.

    gate_ref: SMEM (N,) f32 per-batch spatial-pyramid gate (precomputed).
    x_ref:    VMEM (1, Cin, TILE_P) activation tile (NCHW-native, pixels=lanes).
    w1_ref:   VMEM (Cout, Cin) 1x1 conv weight (resident across all tiles).
    b1_ref:   VMEM (Cout, 1) bias.
    o_ref:    VMEM (1, Cout, TILE_P) output tile.
    """
    n = pl.program_id(0)
    # (Cout, Cin) @ (Cin, TILE_P) on the MXU; pixels stay on the lane axis.
    y = jnp.dot(w1_ref[...], x_ref[0], preferred_element_type=jnp.float32)
    y = y + b1_ref[...]
    # Fused epilogue: per-batch gate scale + trailing nn.ReLU(), streamed out.
    o_ref[0] = jnp.maximum(y * gate_ref[n], 0.0).astype(o_ref.dtype)


def _round_up(v, m):
    return (v + m - 1) // m * m


def _choose_tile_p(p, target):
    """Pick a lane-dense pixel-tile size (multiple of 128) and padded extent."""
    if p <= target and p % 128 == 0:
        return p, p                         # whole level fits one tile
    if p % 128 == 0:
        best = 0
        for t in range(128, target + 1, 128):
            if p % t == 0:
                best = t
        if best >= 512:                     # large exact divisor: no padding
            return best, p
    tile = min(target, _round_up(p, 128))
    return tile, _round_up(p, tile)


def dyconv_single_level(x_nchw, w1_2d, b1, wa_2d, ba, *, tile_p_target=2048):
    """Fused DyConv level: ReLU(Conv1x1(x) * h_sigmoid(AttnConv(Conv1x1(x)))).

    x_nchw: (N, Cin, H, W) f32.  w1_2d: (Cout, Cin).  b1: (Cout,).
    wa_2d: (1, Cin).  ba: (1,).  Returns (N, Cout, H, W) f32.
    """
    n_b, c_in, h, w = x_nchw.shape
    c_out = w1_2d.shape[0]
    p = h * w
    x3 = x_nchw.reshape(n_b, c_in, p)        # free reshape, stays NCHW-native

    # Hoisted spatial-pyramid gate. AdaptiveAvgPool2d(1) is linear, so
    #   mean_HW(conv1x1(x; W1, b1)) == W1 @ mean_HW(x) + b1
    # and the gate only needs the per-batch channel mean of x.
    mean_x = jnp.mean(x3, axis=2)                                 # (N, Cin)
    w_eff = jnp.einsum("oc,o->c", w1_2d, wa_2d[0])                # (Cin,)
    b_eff = jnp.dot(wa_2d[0], b1) + ba[0]                         # scalar
    attn = jnp.maximum(mean_x @ w_eff + b_eff, 0.0)               # (N,)
    gate = (jnp.clip(attn + 3.0, 0.0, 6.0) * (1.0 / 6.0)).astype(jnp.float32)

    # TODO(synk): for bf16 producers, cast x3/w1_2d to bfloat16 here (keep the
    # f32 epilogue + preferred_element_type=f32) to halve HBM read traffic on
    # v6e/v7x; kept f32 for exact parity with the f32 reference.

    tile_p, p_pad = _choose_tile_p(p, tile_p_target)
    if p_pad != p:
        # Remainder handling for levels whose H*W has no multiple-of-128
        # divisor: pad pixels with zeros, slice the result afterwards.
        x3 = jnp.pad(x3, ((0, 0), (0, 0), (0, p_pad - p)))

    b1_2d = b1.reshape(c_out, 1)
    grid = (n_b, p_pad // tile_p)

    # Keep double-buffered in/out tiles + resident weights inside scoped VMEM
    # on every generation (v5e default 16 MiB, v6e/v7x 32 MiB; v7x has only
    # 64 MiB physical).
    need = 2 * 4 * tile_p * (c_in + c_out) + 4 * (c_in * c_out + c_out) + (2 << 20)
    vmem_limit = int(min(max(need, 32 * 1024 * 1024), 48 * 1024 * 1024))

    out = pl.pallas_call(
        dyconv_level_kernel,
        out_shape=jax.ShapeDtypeStruct((n_b, c_out, p_pad), jnp.float32),
        grid_spec=pltpu.PrefetchScalarGridSpec(
            num_scalar_prefetch=0,
            grid=grid,
            in_specs=[
                # Per-batch gate scalars live in SMEM (no padded VMEM tile).
                pl.BlockSpec(memory_space=pltpu.MemorySpace.SMEM),
                # Activation tile: batch n, pixel tile pi (pixels on lanes).
                pl.BlockSpec((1, c_in, tile_p), lambda n, pi: (n, 0, pi)),
                # Weights / bias: constant index_map -> DMA'd once, resident.
                pl.BlockSpec((c_out, c_in), lambda n, pi: (0, 0)),
                pl.BlockSpec((c_out, 1), lambda n, pi: (0, 0)),
            ],
            out_specs=pl.BlockSpec((1, c_out, tile_p), lambda n, pi: (n, 0, pi)),
        ),
        compiler_params=pltpu.CompilerParams(
            dimension_semantics=("parallel", "parallel"),
            vmem_limit_bytes=vmem_limit,
        ),
    )(gate, x3, w1_2d, b1_2d)

    if p_pad != p:
        out = out[:, :, :p]
    return out.reshape(n_b, c_out, h, w)


def init_dyconv_params(key, in_channels, out_channels):
    """Deterministic init mirroring DyConv.init_weights: weights ~ N(0, 0.01), bias = 0."""
    k0, k1, k2, ka = jax.random.split(key, 4)
    params = {
        # DyConv[0]: Conv2d(C, C, 1) -- created, unused in reachable forward
        "w0": jax.random.normal(k0, (out_channels, in_channels, 1, 1), jnp.float32) * 0.01,
        "b0": jnp.zeros((out_channels,), jnp.float32),
        # DyConv[1]: Conv2d(C, C, 1)
        "w1": jax.random.normal(k1, (out_channels, in_channels, 1, 1), jnp.float32) * 0.01,
        "b1": jnp.zeros((out_channels,), jnp.float32),
        # DyConv[2]: Conv2d(C, C, 2) -- created, unused in reachable forward
        "w2": jax.random.normal(k2, (out_channels, in_channels, 2, 2), jnp.float32) * 0.01,
        "b2": jnp.zeros((out_channels,), jnp.float32),
        # AttnConv: Conv2d(C, 1, 1)
        "wa": jax.random.normal(ka, (1, in_channels, 1, 1), jnp.float32) * 0.01,
        "ba": jnp.zeros((1,), jnp.float32),
    }
    return params


def dyconv_forward(params, inputs):
    """Mirrors DyConv.forward for the reachable (single-level) default config."""
    visual_feats = inputs["visual"]
    language_dict_features = inputs["lang"]
    assert len(visual_feats) == 1, (
        "default-config DyConv forward is only runnable with one level "
        "(multi-level branch dereferences undefined `offset`)")

    w1_2d = params["w1"][:, :, 0, 0]          # (Cout, Cin)
    wa_2d = params["wa"][:, :, 0, 0]          # (1, Cin)

    next_x = []
    for feature in visual_feats:
        next_x.append(
            dyconv_single_level(feature, w1_2d, params["b1"], wa_2d, params["ba"]))
    return {"visual": next_x, "lang": language_dict_features}


def dyconv_reference(params, inputs):
    """Pure-JAX reference of the same reachable path (NCHW)."""
    x = inputs["visual"][0]
    w1 = params["w1"][:, :, 0, 0]             # (Cout, Cin)
    wa = params["wa"][:, :, 0, 0]             # (1, Cin)
    y = jnp.einsum("nchw,oc->nohw", x, w1) + params["b1"].reshape(1, -1, 1, 1)
    pooled = jnp.mean(y, axis=(2, 3), keepdims=True)
    attn = jnp.einsum("nchw,oc->nohw", pooled, wa) + params["ba"].reshape(1, 1, 1, 1)
    attn = jnp.maximum(attn, 0.0)
    gate = jnp.clip(attn + 3.0, 0.0, 6.0) / 6.0
    out = jnp.maximum(y * gate, 0.0)
    return {"visual": [out], "lang": inputs["lang"]}


if __name__ == "__main__":
    key = jax.random.PRNGKey(0)
    k_param, k_x, k_lang = jax.random.split(key, 3)

    N, C, H, W = 2, 128, 16, 16
    params = init_dyconv_params(k_param, C, C)

    x = jax.random.normal(k_x, (N, C, H, W), jnp.float32)
    lang = {"hidden": jax.random.normal(k_lang, (N, 8, 32), jnp.float32)}
    inputs = {"visual": [x], "lang": lang}

    out = dyconv_forward(params, inputs)
    out_vis = jax.block_until_ready(out["visual"][0])

    ref = dyconv_reference(params, inputs)["visual"][0]
    assert out_vis.shape == (N, C, H, W)
    assert jnp.allclose(out_vis, ref, atol=1e-5, rtol=1e-5), "mismatch vs reference"
    # lang features pass through unchanged
    assert out["lang"] is lang

    print("KERNEL_OK")
</pallas_src>

<mosaic_0001>
module attributes {stable_mosaic.version = 11 : i64} {
  func.func @dyconv_level_kernel(%arg0: i32, %arg1: i32, %arg2: memref<2xf32, #tpu.memory_space<smem>>, %arg3: memref<1x128x256xf32, #tpu.memory_space<vmem>>, %arg4: memref<128x128xf32, #tpu.memory_space<vmem>>, %arg5: memref<128x1xf32, #tpu.memory_space<vmem>>, %arg6: memref<1x128x256xf32, #tpu.memory_space<vmem>>) attributes {dimension_semantics = [#tpu.dimension_semantics<parallel>, #tpu.dimension_semantics<parallel>], iteration_bounds = array<i64: 2, 1>, scalar_prefetch = 0 : i64, scratch_operands = 0 : i64, tpu.core_type = #tpu.core_type<tc>, window_params = [{transform_indices = @transform_0, window_bounds = array<i64: 2>}, {transform_indices = @transform_1, window_bounds = array<i64: 1, 128, 256>}, {pipeline_mode = #tpu.pipeline_mode<synchronous>, transform_indices = @transform_2, window_bounds = array<i64: 128, 128>}, {pipeline_mode = #tpu.pipeline_mode<synchronous>, transform_indices = @transform_3, window_bounds = array<i64: 128, 1>}, {transform_indices = @transform_4, window_bounds = array<i64: 1, 128, 256>}]} {
    %c0 = arith.constant 0 : index
    %c0_0 = arith.constant 0 : index
    %0 = vector.load %arg4[%c0, %c0_0] : memref<128x128xf32, #tpu.memory_space<vmem>>, vector<128x128xf32>
    %c0_1 = arith.constant 0 : index
    %c0_2 = arith.constant 0 : index
    %c0_3 = arith.constant 0 : index
    %1 = vector.load %arg3[%c0_1, %c0_2, %c0_3] : memref<1x128x256xf32, #tpu.memory_space<vmem>>, vector<1x128x256xf32>
    %2 = vector.shape_cast %1 : vector<1x128x256xf32> to vector<128x256xf32>
    %cst = arith.constant dense<0.000000e+00> : vector<128x256xf32>
    %3 = tpu.matmul %0, %2, %cst {dimension_numbers = #tpu.dot_dimension_numbers<[1], [0], [0], [1], [0, 0, 1, 1], [], []>} : vector<128x128xf32>, vector<128x256xf32>, vector<128x256xf32> -> vector<128x256xf32>
    %c0_4 = arith.constant 0 : index
    %c0_5 = arith.constant 0 : index
    %4 = vector.load %arg5[%c0_4, %c0_5] : memref<128x1xf32, #tpu.memory_space<vmem>>, vector<128x1xf32>
    %5 = vector.broadcast %4 : vector<128x1xf32> to vector<128x256xf32>
    %6 = arith.addf %3, %5 : vector<128x256xf32>
    %7 = arith.index_cast %arg0 : i32 to index
    %8 = memref.load %arg2[%7] : memref<2xf32, #tpu.memory_space<smem>>
    %9 = vector.broadcast %8 : f32 to vector<128x256xf32>
    %10 = arith.mulf %6, %9 : vector<128x256xf32>
    %cst_6 = arith.constant 0.000000e+00 : f32
    %11 = vector.broadcast %cst_6 : f32 to vector<128x256xf32>
    %12 = arith.maximumf %10, %11 : vector<128x256xf32>
    %c0_7 = arith.constant 0 : index
    %c0_8 = arith.constant 0 : index
    %c0_9 = arith.constant 0 : index
    %13 = vector.load %arg6[%c0_7, %c0_8, %c0_9] : memref<1x128x256xf32, #tpu.memory_space<vmem>>, vector<1x128x256xf32>
    %14 = vector.shape_cast %13 : vector<1x128x256xf32> to vector<128x256xf32>
    %15 = vector.shape_cast %12 : vector<128x256xf32> to vector<1x128x256xf32>
    tpu.vector_store %arg6[%c0_7, %c0_8, %c0_9], %15 {strides = array<i32>} : memref<1x128x256xf32, #tpu.memory_space<vmem>>, vector<1x128x256xf32>,
    return
  }
  func.func @transform_0(%arg0: i32, %arg1: i32) -> i32 {
    %c0_i32 = arith.constant 0 : i32
    %c0_i32_0 = arith.constant 0 : i32
    return %c0_i32 : i32
  }
  func.func @transform_1(%arg0: i32, %arg1: i32) -> (i32, i32, i32) {
    %c0_i32 = arith.constant 0 : i32
    %c0_i32_0 = arith.constant 0 : i32
    return %arg0, %c0_i32, %arg1 : i32, i32, i32
  }
  func.func @transform_2(%arg0: i32, %arg1: i32) -> (i32, i32) {
    %c0_i32 = arith.constant 0 : i32
    %c0_i32_0 = arith.constant 0 : i32
    %c0_i32_1 = arith.constant 0 : i32
    return %c0_i32, %c0_i32_0 : i32, i32
  }
  func.func @transform_3(%arg0: i32, %arg1: i32) -> (i32, i32) {
    %c0_i32 = arith.constant 0 : i32
    %c0_i32_0 = arith.constant 0 : i32
    %c0_i32_1 = arith.constant 0 : i32
    return %c0_i32, %c0_i32_0 : i32, i32
  }
  func.func @transform_4(%arg0: i32, %arg1: i32) -> (i32, i32, i32) {
    %c0_i32 = arith.constant 0 : i32
    %c0_i32_0 = arith.constant 0 : i32
    return %arg0, %c0_i32, %arg1 : i32, i32, i32
  }
}

</mosaic_0001>

<llo_original>
// kernel: tpu_custom_call.1
$region0: #{tpu_custom_call.1}
  #allocation0 [shape = 'u32[]', space=smem, size = 0x4, offset = 0x4, fixed_abs, tag = 'smem constant byte address 0x4 - core index']
  #allocation1 [shape = 'u32[144,128]{1,0:T(1,128)}', space=vmem, size = 0x12000, scoped, tag = 'internal scratch']
  %s0 = inlined_call_operand.vmem [shape: f32[2], index: 0, kind: input, shape index: {}]
  %s1 = inlined_call_operand.hbm [shape: f32[2,128,256], index: 1, kind: input, shape index: {}]
  %s2 = inlined_call_operand.vmem [shape: f32[128,128], index: 2, kind: input, shape index: {}]
  %s3 = inlined_call_operand.vmem [shape: f32[128,1], index: 3, kind: input, shape index: {}]
  %s4 = inlined_call_operand.hbm [shape: f32[2,128,256], index: 4, kind: output, shape index: {}]
  %s5 = sld [smem:[#allocation0]]
  $region57: #{tpu_custom_call.1} parent=0
    _
  %s7 = ssub.s32 1, %s5
  %s8 = scalar_select 0, %s7, %s5
  $region1: #{tpu_custom_call.1} parent=0
    #allocation2 [shape = 'u8[512]{0}', space=smem, size = 0x200, scoped, tag = 'input window, operand 0, single buffered']
    #allocation3 [shape = 's32[2]{0}', space=sflag, size = 0x8, scoped, tag = 'scoped memory for tpu_custom_call.1']
    #allocation4 [shape = 's32[2]{0}', space=sflag, size = 0x8, scoped, tag = 'scoped memory for tpu_custom_call.1']
    #allocation5 [shape = 's32[2]{0}', space=sflag, size = 0x8, scoped, tag = 'scoped memory for tpu_custom_call.1']
    #allocation6 [shape = 'u8[262144]{0}', space=vmem, size = 0x40000, scoped, tag = 'input window, operand 1']
    #allocation7 [shape = 'u8[262144]{0}', space=vmem, size = 0x40000, scoped, tag = 'output window, operand 0']
    %9 = vsyncpa [#allocation5], 0
    %10 = vsyncpa [#allocation3], 0
    %s11 = scalar_lea.sflag [#allocation3], 1
    %12 = vsyncpa %s11, 0
    %13 = vsyncpa [#allocation4], 0
    %s14 = scalar_lea.sflag [#allocation4], 1
    %15 = vsyncpa %s14, 0
    loop: start=0, step=1, limit=4
    $region2: #{tpu_custom_call.1} parent=1 // loop_pre_header
      _
    $region3: #{tpu_custom_call.1} parent=1 // loop_header
      %s17 = sphi 0, %s21
      %p18 = scmp.ge.s32.totalorder %s17, 4
      %s24 = sphi 0, %s36
      %s25 = sphi 0, %s32
      %s26 = sphi 0, %s24
      %s27 = sphi 0, %s25
      %s28 = sphi 0, %s26
      %s29 = sphi 0, %s27
      %s37 = sphi 0, %s37
      %s39 = sphi 0, %s37
      %s40 = sphi 0, %s39
      %s54 = sphi 0, %s40
      %s62 = sphi 0, %s64
      %s65 = sphi 0, %s62
      %s66 = sphi 0, %s65
      %s82 = sphi 0, %s66
      %s86 = sphi 0, %s86
      %s88 = sphi 0, %s86
      %s89 = sphi 0, %s88
      %s103 = sphi 0, %s89
      %s107 = sphi 0, %s107
      %s109 = sphi 0, %s107
      %s110 = sphi 0, %s109
      %s124 = sphi 0, %s110
      %s132 = sphi 0, %s134
      %s135 = sphi 0, %s132
      %s136 = sphi 0, %s135
      %s152 = sphi 0, %s136
    $region4: #{tpu_custom_call.1} parent=1 // loop_header_branch
      %20 = sbr.rel (%p18) target = $region8
    $region5: #{tpu_custom_call.1} parent=1 // loop_body
      %s22 = ssub.s32 %s17, 1
      %s23 = ssub.s32 %s17, 2
      %s30 = sadd.s32 1, %s25
      %p31 = scmp.ge.s32.totalorder %s30, 1
      %s32 = scalar_select %p31, 0, %s30
      %s33 = sadd.s32 1, %s24
      %s34 = scalar_select %p31, %s33, %s24
      %p35 = scmp.ge.s32.totalorder %s34, 2
      %s36 = scalar_select %p35, 0, %s34
      %s38 = sadd.s32 %s37, 1
      %p41 = scmp.eq.s32.totalorder %s17, 1
      %p42 = scmp.ne.s32.totalorder %s37, %s39
      %p43 = scmp.eq.s32.totalorder %s17, 0
      %p44 = por %p42, %p43
      %p45 = scmp.ne.s32.totalorder %s37, %s39
      %p46 = scmp.eq.s32.totalorder %s22, 1
      %p47 = por %p45, %p46
      %p48 = scmp.ne.s32.totalorder %s39, %s40
      %p49 = scmp.eq.s32.totalorder %s22, 0
      %p50 = por %p48, %p49
      %p51 = scmp.ne.s32.totalorder %s39, %s40
      %p52 = scmp.eq.s32.totalorder %s23, 1
      %p53 = por %p51, %p52
      %p55 = scmp.ne.s32.totalorder %s40, %s54
      %p56 = scmp.eq.s32.totalorder %s23, 0
      %p57 = por %p55, %p56
      %s58 = ssub.s32 %s24, %s36
      %s59 = ssub.s32 %s25, %s32
      %s60 = sor.u32 %s58, %s59
      %p61 = scmp.eq.s32.totalorder %s60, 0
      %s63 = sadd.s32 %s62, 1
      %s64 = scalar_select %p61, %s62, %s63
      %p67 = pneg %p61
      %p68 = scmp.eq.s32.totalorder %s17, 1
      %p69 = por %p67, %p68
      %p70 = scmp.ne.s32.totalorder %s62, %s65
      %p71 = scmp.eq.s32.totalorder %s17, 0
      %p72 = por %p70, %p71
      %p73 = scmp.ne.s32.totalorder %s62, %s65
      %p74 = scmp.eq.s32.totalorder %s22, 1
      %p75 = por %p73, %p74
      %p76 = scmp.ne.s32.totalorder %s65, %s66
      %p77 = scmp.eq.s32.totalorder %s22, 0
      %p78 = por %p76, %p77
      %p79 = scmp.ne.s32.totalorder %s65, %s66
      %p80 = scmp.eq.s32.totalorder %s23, 1
      %p81 = por %p79, %p80
      %p83 = scmp.ne.s32.totalorder %s66, %s82
      %p84 = scmp.eq.s32.totalorder %s23, 0
      %p85 = por %p83, %p84
      %s87 = sadd.s32 %s86, 1
      %p90 = scmp.eq.s32.totalorder %s17, 1
      %p91 = scmp.ne.s32.totalorder %s86, %s88
      %p92 = scmp.eq.s32.totalorder %s17, 0
      %p93 = por %p91, %p92
      %p94 = scmp.ne.s32.totalorder %s86, %s88
      %p95 = scmp.eq.s32.totalorder %s22, 1
      %p96 = por %p94, %p95
      %p97 = scmp.ne.s32.totalorder %s88, %s89
      %p98 = scmp.eq.s32.totalorder %s22, 0
      %p99 = por %p97, %p98
      %p100 = scmp.ne.s32.totalorder %s88, %s89
      %p101 = scmp.eq.s32.totalorder %s23, 1
      %p102 = por %p100, %p101
      %p104 = scmp.ne.s32.totalorder %s89, %s103
      %p105 = scmp.eq.s32.totalorder %s23, 0
      %p106 = por %p104, %p105
      %s108 = sadd.s32 %s107, 1
      %p111 = scmp.eq.s32.totalorder %s17, 1
      %p112 = scmp.ne.s32.totalorder %s107, %s109
      %p113 = scmp.eq.s32.totalorder %s17, 0
      %p114 = por %p112, %p113
      %p115 = scmp.ne.s32.totalorder %s107, %s109
      %p116 = scmp.eq.s32.totalorder %s22, 1
      %p117 = por %p115, %p116
      %p118 = scmp.ne.s32.totalorder %s109, %s110
      %p119 = scmp.eq.s32.totalorder %s22, 0
      %p120 = por %p118, %p119
      %p121 = scmp.ne.s32.totalorder %s109, %s110
      %p122 = scmp.eq.s32.totalorder %s23, 1
      %p123 = por %p121, %p122
      %p125 = scmp.ne.s32.totalorder %s110, %s124
      %p126 = scmp.eq.s32.totalorder %s23, 0
      %p127 = por %p125, %p126
      %s128 = ssub.s32 %s24, %s36
      %s129 = ssub.s32 %s25, %s32
      %s130 = sor.u32 %s128, %s129
      %p131 = scmp.eq.s32.totalorder %s130, 0
      %s133 = sadd.s32 %s132, 1
      %s134 = scalar_select %p131, %s132, %s133
      %p137 = pneg %p131
      %p138 = scmp.eq.s32.totalorder %s17, 1
      %p139 = por %p137, %p138
      %p140 = scmp.ne.s32.totalorder %s132, %s135
      %p141 = scmp.eq.s32.totalorder %s17, 0
      %p142 = por %p140, %p141
      %p143 = scmp.ne.s32.totalorder %s132, %s135
      %p144 = scmp.eq.s32.totalorder %s22, 1
      %p145 = por %p143, %p144
      %p146 = scmp.ne.s32.totalorder %s135, %s136
      %p147 = scmp.eq.s32.totalorder %s22, 0
      %p148 = por %p146, %p147
      %p149 = scmp.ne.s32.totalorder %s135, %s136
      %p150 = scmp.eq.s32.totalorder %s23, 1
      %p151 = por %p149, %p150
      %p153 = scmp.ne.s32.totalorder %s136, %s152
      %p154 = scmp.eq.s32.totalorder %s23, 0
      %p155 = por %p153, %p154
      %p156 = scmp.le.s32.totalorder 1, %s17
      %p157 = scmp.lt.s32.totalorder %s17, 3
      %p158 = pnand %p156, %p157
      %p159 = pneg %p158
      // Predicated region
      $region9: #{tpu_custom_call.1} parent=5 // pred_check
        _
      $region10: #{tpu_custom_call.1} parent=5 // pred_check_branch
        %161 = sbr.rel (%p158) target = $region12
      $region11: #{tpu_custom_call.1} parent=5 // pred_region
        %s162 = ssub.s32 %s17, 1
        // Predicated region
        $region13: #{tpu_custom_call.1} parent=11 // pred_check
          %p163 = pneg %p50
        $region14: #{tpu_custom_call.1} parent=11 // pred_check_branch
          %165 = sbr.rel (%p163) target = $region16
        $region15: #{tpu_custom_call.1} parent=11 // pred_region
          %s167 = ssub.s32 16, 16
          %168 = vsyncadd [#allocation5], %s167
          %s170 = sshll.u32 %s0, 4
          %s171 = int_to_ptr.vmem [resolvable:$true] %s170
          %173 = dma.vmem_to_smem %s171, 16, [#allocation2], [#allocation5]
        $region16: #{tpu_custom_call.1} parent=11 // pred_fallthru
          _
        // Predicated region
        $region17: #{tpu_custom_call.1} parent=11 // pred_check
          %p174 = pneg %p99
        $region18: #{tpu_custom_call.1} parent=11 // pred_check_branch
          %176 = sbr.rel (%p174) target = $region20
        $region19: #{tpu_custom_call.1} parent=11 // pred_region
          _
        $region20: #{tpu_custom_call.1} parent=11 // pred_fallthru
          _
        // Predicated region
        $region21: #{tpu_custom_call.1} parent=11 // pred_check
          %p177 = pneg %p120
        $region22: #{tpu_custom_call.1} parent=11 // pred_check_branch
          %179 = sbr.rel (%p177) target = $region24
        $region23: #{tpu_custom_call.1} parent=11 // pred_region
          _
        $region24: #{tpu_custom_call.1} parent=11 // pred_fallthru
          _
      $region12: #{tpu_custom_call.1} parent=5 // pred_fallthru
        _
      %p180 = scmp.lt.s32.totalorder %s17, 2
      // Predicated region
      $region25: #{tpu_custom_call.1} parent=5 // pred_check
        %p181 = pneg %p180
      $region26: #{tpu_custom_call.1} parent=5 // pred_check_branch
        %183 = sbr.rel (%p181) target = $region28
      $region27: #{tpu_custom_call.1} parent=5 // pred_region
        // Predicated region
        $region29: #{tpu_custom_call.1} parent=27 // pred_check
          %p184 = pneg %p72
        $region30: #{tpu_custom_call.1} parent=27 // pred_check_branch
          %186 = sbr.rel (%p184) target = $region32
        $region31: #{tpu_custom_call.1} parent=27 // pred_region
          %s187 = sand.u32 %s62, 1
          %s188 = scalar_lea.sflag [#allocation3], %s187
          %s189 = sand.u32 %s62, 1
          %s190 = smul.addr %s189, 256
          %s191 = scalar_lea.vmem [#allocation6], %s190
          %s192 = smul.u32 2, %s25
          %s194 = ssub.s32 4096, 4096
          %195 = vsyncadd %s188, %s194
          %s196 = smul.addr %s24, 32
          %s197 = sadd.s32 %s192, %s196
          %s198 = smul.addr %s197, 128
          %s199 = scalar_lea.hbm %s1, %s198
          %s200 = sshll.u32 %s191, 4
          %s201 = int_to_ptr.vmem [resolvable:$true] %s200
          %206 = dma.hbm_to_vmem [thread:$0]  %s199, 4096, %s201, %s188, 256, 256, 16
        $region32: #{tpu_custom_call.1} parent=27 // pred_fallthru
          _
      $region28: #{tpu_custom_call.1} parent=5 // pred_fallthru
        _
      %p207 = scmp.le.s32.totalorder 1, %s17
      %p208 = scmp.lt.s32.totalorder %s17, 3
      %p209 = pnand %p207, %p208
      %p210 = pneg %p209
      // Predicated region
      $region33: #{tpu_custom_call.1} parent=5 // pred_check
        _
      $region34: #{tpu_custom_call.1} parent=5 // pred_check_branch
        %212 = sbr.rel (%p209) target = $region36
      $region35: #{tpu_custom_call.1} parent=5 // pred_region
        %s213 = ssub.s32 %s17, 1
        // Predicated region
        $region37: #{tpu_custom_call.1} parent=35 // pred_check
          %p214 = pneg %p50
        $region38: #{tpu_custom_call.1} parent=35 // pred_check_branch
          %216 = sbr.rel (%p214) target = $region40
        $region39: #{tpu_custom_call.1} parent=35 // pred_region
          %217 = dma.done [#allocation5], 16
        $region40: #{tpu_custom_call.1} parent=35 // pred_fallthru
          _
        %s218 = sand.u32 %s65, 1
        %s219 = scalar_lea.sflag [#allocation3], %s218
        %s220 = sand.u32 %s65, 1
        %s221 = smul.addr %s220, 256
        %s222 = scalar_lea.vmem [#allocation6], %s221
        // Predicated region
        $region41: #{tpu_custom_call.1} parent=35 // pred_check
          %p223 = pneg %p78
        $region42: #{tpu_custom_call.1} parent=35 // pred_check_branch
          %225 = sbr.rel (%p223) target = $region44
        $region43: #{tpu_custom_call.1} parent=35 // pred_region
          %226 = dma.done %s219, 4096
        $region44: #{tpu_custom_call.1} parent=35 // pred_fallthru
          _
        %227 = sfence
        %p228 = pneg %p50
        %p229 = pneg %p47
        %s230 = sand.u32 %s65, 1
        %s231 = scalar_lea.sflag [#allocation3], %s230
        %s232 = sand.u32 %s65, 1
        %s233 = smul.addr %s232, 256
        %s234 = scalar_lea.vmem [#allocation6], %s233
        %p235 = pneg %p78
        %p236 = pneg %p75
        %p237 = pneg %p99
        %p238 = pneg %p96
        %p239 = pneg %p120
        %p240 = pneg %p117
        %p241 = pneg %p148
        %p242 = pneg %p145
        %s243 = sand.u32 %s135, 1
        %s244 = scalar_lea.sflag [#allocation4], %s243
        %s245 = sand.u32 %s135, 1
        %s246 = smul.addr %s245, 256
        %s247 = scalar_lea.vmem [#allocation7], %s246
        %s248 = smul.u32 2, %s27
        %s249 = smul.u32 2, %s27
        %v250 = vld [vmem:[%s2] sm:$0xff]
        %v251 = vld [vmem:[%s2 + $0x8] sm:$0xff]
        %v252 = vld [vmem:[%s2 + $0x10] sm:$0xff]
        %v253 = vld [vmem:[%s2 + $0x18] sm:$0xff]
        %v254 = vld [vmem:[%s2 + $0x20] sm:$0xff]
        %v255 = vld [vmem:[%s2 + $0x28] sm:$0xff]
        %v256 = vld [vmem:[%s2 + $0x30] sm:$0xff]
        %v257 = vld [vmem:[%s2 + $0x38] sm:$0xff]
        %v258 = vld [vmem:[%s2 + $0x40] sm:$0xff]
        %v259 = vld [vmem:[%s2 + $0x48] sm:$0xff]
        %v260 = vld [vmem:[%s2 + $0x50] sm:$0xff]
        %v261 = vld [vmem:[%s2 + $0x58] sm:$0xff]
        %v262 = vld [vmem:[%s2 + $0x60] sm:$0xff]
        %v263 = vld [vmem:[%s2 + $0x68] sm:$0xff]
        %v264 = vld [vmem:[%s2 + $0x70] sm:$0xff]
        %v265 = vld [vmem:[%s2 + $0x78] sm:$0xff]
        %v266 = vld [vmem:[%s222] sm:$0xff]
        %v267 = vld [vmem:[%s222 + $0x8] sm:$0xff]
        %v268 = vld [vmem:[%s222 + $0x10] sm:$0xff]
        %v269 = vld [vmem:[%s222 + $0x18] sm:$0xff]
        %v270 = vld [vmem:[%s222 + $0x20] sm:$0xff]
        %v271 = vld [vmem:[%s222 + $0x28] sm:$0xff]
        %v272 = vld [vmem:[%s222 + $0x30] sm:$0xff]
        %v273 = vld [vmem:[%s222 + $0x38] sm:$0xff]
        %v274 = vld [vmem:[%s222 + $0x40] sm:$0xff]
        %v275 = vld [vmem:[%s222 + $0x48] sm:$0xff]
        %v276 = vld [vmem:[%s222 + $0x50] sm:$0xff]
        %v277 = vld [vmem:[%s222 + $0x58] sm:$0xff]
        %v278 = vld [vmem:[%s222 + $0x60] sm:$0xff]
        %v279 = vld [vmem:[%s222 + $0x68] sm:$0xff]
        %v280 = vld [vmem:[%s222 + $0x70] sm:$0xff]
        %v281 = vld [vmem:[%s222 + $0x78] sm:$0xff]
        %v282 = vld [vmem:[%s222 + $0x80] sm:$0xff]
        %v283 = vld [vmem:[%s222 + $0x88] sm:$0xff]
        %v284 = vld [vmem:[%s222 + $0x90] sm:$0xff]
        %v285 = vld [vmem:[%s222 + $0x98] sm:$0xff]
        %v286 = vld [vmem:[%s222 + $0xa0] sm:$0xff]
        %v287 = vld [vmem:[%s222 + $0xa8] sm:$0xff]
        %v288 = vld [vmem:[%s222 + $0xb0] sm:$0xff]
        %v289 = vld [vmem:[%s222 + $0xb8] sm:$0xff]
        %v290 = vld [vmem:[%s222 + $0xc0] sm:$0xff]
        %v291 = vld [vmem:[%s222 + $0xc8] sm:$0xff]
        %v292 = vld [vmem:[%s222 + $0xd0] sm:$0xff]
        %v293 = vld [vmem:[%s222 + $0xd8] sm:$0xff]
        %v294 = vld [vmem:[%s222 + $0xe0] sm:$0xff]
        %v295 = vld [vmem:[%s222 + $0xe8] sm:$0xff]
        %v296 = vld [vmem:[%s222 + $0xf0] sm:$0xff]
        %v297 = vld [vmem:[%s222 + $0xf8] sm:$0xff]
        %v298 = vld [vmem:[%s3] sm:$0xff]
        %v299 = vld [vmem:[%s3 + $0x8] sm:$0xff]
        %v300 = vld [vmem:[%s3 + $0x10] sm:$0xff]
        %v301 = vld [vmem:[%s3 + $0x18] sm:$0xff]
        %v302 = vld [vmem:[%s3 + $0x20] sm:$0xff]
        %v303 = vld [vmem:[%s3 + $0x28] sm:$0xff]
        %v304 = vld [vmem:[%s3 + $0x30] sm:$0xff]
        %v305 = vld [vmem:[%s3 + $0x38] sm:$0xff]
        %v306 = vld [vmem:[%s3 + $0x40] sm:$0xff]
        %v307 = vld [vmem:[%s3 + $0x48] sm:$0xff]
        %v308 = vld [vmem:[%s3 + $0x50] sm:$0xff]
        %v309 = vld [vmem:[%s3 + $0x58] sm:$0xff]
        %v310 = vld [vmem:[%s3 + $0x60] sm:$0xff]
        %v311 = vld [vmem:[%s3 + $0x68] sm:$0xff]
        %v312 = vld [vmem:[%s3 + $0x70] sm:$0xff]
        %v313 = vld [vmem:[%s3 + $0x78] sm:$0xff]
        %315 = vset.pattern.permute.xlu0 0
        %316 = vperm.xlu0 %315, %v298
        %v317 = vpop.permute.xlu0 %316
        %320 = vset.pattern.permute.xlu0 0
        %321 = vperm.xlu0 %320, %v299
        %v322 = vpop.permute.xlu0 %321
        %325 = vset.pattern.permute.xlu0 0
        %326 = vperm.xlu0 %325, %v300
        %v327 = vpop.permute.xlu0 %326
        %330 = vset.pattern.permute.xlu0 0
        %331 = vperm.xlu0 %330, %v301
        %v332 = vpop.permute.xlu0 %331
        %335 = vset.pattern.permute.xlu0 0
        %336 = vperm.xlu0 %335, %v302
        %v337 = vpop.permute.xlu0 %336
        %340 = vset.pattern.permute.xlu0 0
        %341 = vperm.xlu0 %340, %v303
        %v342 = vpop.permute.xlu0 %341
        %345 = vset.pattern.permute.xlu0 0
        %346 = vperm.xlu0 %345, %v304
        %v347 = vpop.permute.xlu0 %346
        %350 = vset.pattern.permute.xlu0 0
        %351 = vperm.xlu0 %350, %v305
        %v352 = vpop.permute.xlu0 %351
        %355 = vset.pattern.permute.xlu0 0
        %356 = vperm.xlu0 %355, %v306
        %v357 = vpop.permute.xlu0 %356
        %360 = vset.pattern.permute.xlu0 0
        %361 = vperm.xlu0 %360, %v307
        %v362 = vpop.permute.xlu0 %361
        %365 = vset.pattern.permute.xlu0 0
        %366 = vperm.xlu0 %365, %v308
        %v367 = vpop.permute.xlu0 %366
        %370 = vset.pattern.permute.xlu0 0
        %371 = vperm.xlu0 %370, %v309
        %v372 = vpop.permute.xlu0 %371
        %375 = vset.pattern.permute.xlu0 0
        %376 = vperm.xlu0 %375, %v310
        %v377 = vpop.permute.xlu0 %376
        %380 = vset.pattern.permute.xlu0 0
        %381 = vperm.xlu0 %380, %v311
        %v382 = vpop.permute.xlu0 %381
        %385 = vset.pattern.permute.xlu0 0
        %386 = vperm.xlu0 %385, %v312
        %v387 = vpop.permute.xlu0 %386
        %390 = vset.pattern.permute.xlu0 0
        %391 = vperm.xlu0 %390, %v313
        %v392 = vpop.permute.xlu0 %391
        %394 = vmatprep.subr.mxu0 %v297
        %395 = vmatpush1.msra.mxu0 %v296
        %396 = vmatprep.subr.mxu0 %v295
        %397 = vmatpush1.msra.mxu0 %v294
        %398 = vmatprep.subr.mxu0 %v293
        %399 = vmatpush1.msra.mxu0 %v292
        %400 = vmatprep.subr.mxu0 %v291
        %401 = vmatpush1.msra.mxu0 %v290
        %402 = vmatprep.subr.mxu0 %v289
        %403 = vmatpush1.msra.mxu0 %v288
        %404 = vmatprep.subr.mxu0 %v287
        %405 = vmatpush1.msra.mxu0 %v286
        %406 = vmatprep.subr.mxu0 %v285
        %407 = vmatpush1.msra.mxu0 %v284
        %408 = vmatprep.subr.mxu0 %v283
        %409 = vmatpush1.msra.mxu0 %v282
        %410 = vmatprep.subr.mxu0 %v281
        %411 = vmatpush1.msra.mxu0 %v280
        %412 = vmatprep.subr.mxu0 %v279
        %413 = vmatpush1.msra.mxu0 %v278
        %414 = vmatprep.subr.mxu0 %v277
        %415 = vmatpush1.msra.mxu0 %v276
        %416 = vmatprep.subr.mxu0 %v275
        %417 = vmatpush1.msra.mxu0 %v274
        %418 = vmatprep.subr.mxu0 %v273
        %419 = vmatpush1.msra.mxu0 %v272
        %420 = vmatprep.subr.mxu0 %v271
        %421 = vmatpush1.msra.mxu0 %v270
        %422 = vmatprep.subr.mxu0 %v269
        %423 = vmatpush1.msra.mxu0 %v268
        %424 = vmatprep.subr.mxu0 %v267
        %425 = vmatpush1.msra.mxu0 %v266
        %426 = vmatprep.subr.mxu0 0.0
        %427 = vmatpush2.msra.mxu0 0.0
        %428 = vmatprep.subr.mxu0 0.0
        %429 = vmatpush2.msra.mxu0 0.0
        %430 = vmatprep.subr.mxu0 0.0
        %431 = vmatpush2.msra.mxu0 0.0
        %432 = vmatprep.subr.mxu0 0.0
        %433 = vmatpush2.msra.mxu0 0.0
        %434 = vmatprep.subr.mxu0 0.0
        %435 = vmatpush2.msra.mxu0 0.0
        %436 = vmatprep.subr.mxu0 0.0
        %437 = vmatpush2.msra.mxu0 0.0
        %438 = vmatprep.subr.mxu0 0.0
        %439 = vmatpush2.msra.mxu0 0.0
        %440 = vmatprep.subr.mxu0 0.0
        %441 = vmatpush2.msra.mxu0 0.0
        %442 = vmatprep.subr.mxu0 0.0
        %443 = vmatpush2.msra.mxu0 0.0
        %444 = vmatprep.subr.mxu0 0.0
        %445 = vmatpush2.msra.mxu0 0.0
        %446 = vmatprep.subr.mxu0 0.0
        %447 = vmatpush2.msra.mxu0 0.0
        %448 = vmatprep.subr.mxu0 0.0
        %449 = vmatpush2.msra.mxu0 0.0
        %450 = vmatprep.subr.mxu0 0.0
        %451 = vmatpush2.msra.mxu0 0.0
        %452 = vmatprep.subr.mxu0 0.0
        %453 = vmatpush2.msra.mxu0 0.0
        %454 = vmatprep.subr.mxu0 0.0
        %455 = vmatpush2.msra.mxu0 0.0
        %456 = vmatprep.subr.mxu0 0.0
        %457 = vmatpush2.msra.mxu0 0.0
        %458 = vmatprep.mubr.f32.mxu0 0.0
        %459 = vmatmul.mubr.f32.gmra.mxu0 %v250
        %v460 = vpop.f32.mrf.mxu0
        %v461 = vadd.f32 %v317, %v460
        %v462 = vpop.f32.mrf.mxu0
        %v463 = vadd.f32 %v317, %v462
        %464 = vmatprep.mubr.f32.mxu0 0.0
        %465 = vmatmul.mubr.f32.gmra.mxu0 %v251
        %v466 = vpop.f32.mrf.mxu0
        %v467 = vadd.f32 %v322, %v466
        %v468 = vpop.f32.mrf.mxu0
        %v469 = vadd.f32 %v322, %v468
        %470 = vmatprep.mubr.f32.mxu0 0.0
        %471 = vmatmul.mubr.f32.gmra.mxu0 %v252
        %v472 = vpop.f32.mrf.mxu0
        %v473 = vadd.f32 %v327, %v472
        %v474 = vpop.f32.mrf.mxu0
        %v475 = vadd.f32 %v327, %v474
        %476 = vmatprep.mubr.f32.mxu0 0.0
        %477 = vmatmul.mubr.f32.gmra.mxu0 %v253
        %v478 = vpop.f32.mrf.mxu0
        %v479 = vadd.f32 %v332, %v478
        %v480 = vpop.f32.mrf.mxu0
        %v481 = vadd.f32 %v332, %v480
        %482 = vmatprep.mubr.f32.mxu0 0.0
        %483 = vmatmul.mubr.f32.gmra.mxu0 %v254
        %v484 = vpop.f32.mrf.mxu0
        %v485 = vadd.f32 %v337, %v484
        %v486 = vpop.f32.mrf.mxu0
        %v487 = vadd.f32 %v337, %v486
        %488 = vmatprep.mubr.f32.mxu0 0.0
        %489 = vmatmul.mubr.f32.gmra.mxu0 %v255
        %v490 = vpop.f32.mrf.mxu0
        %v491 = vadd.f32 %v342, %v490
        %v492 = vpop.f32.mrf.mxu0
        %v493 = vadd.f32 %v342, %v492
        %494 = vmatprep.mubr.f32.mxu0 0.0
        %495 = vmatmul.mubr.f32.gmra.mxu0 %v256
        %v496 = vpop.f32.mrf.mxu0
        %v497 = vadd.f32 %v347, %v496
        %v498 = vpop.f32.mrf.mxu0
        %v499 = vadd.f32 %v347, %v498
        %500 = vmatprep.mubr.f32.mxu0 0.0
        %501 = vmatmul.mubr.f32.gmra.mxu0 %v257
        %v502 = vpop.f32.mrf.mxu0
        %v503 = vadd.f32 %v352, %v502
        %v504 = vpop.f32.mrf.mxu0
        %v505 = vadd.f32 %v352, %v504
        %506 = vmatprep.mubr.f32.mxu0 0.0
        %507 = vmatmul.mubr.f32.gmra.mxu0 %v258
        %v508 = vpop.f32.mrf.mxu0
        %v509 = vadd.f32 %v357, %v508
        %v510 = vpop.f32.mrf.mxu0
        %v511 = vadd.f32 %v357, %v510
        %512 = vmatprep.mubr.f32.mxu0 0.0
        %513 = vmatmul.mubr.f32.gmra.mxu0 %v259
        %v514 = vpop.f32.mrf.mxu0
        %v515 = vadd.f32 %v362, %v514
        %v516 = vpop.f32.mrf.mxu0
        %v517 = vadd.f32 %v362, %v516
        %518 = vmatprep.mubr.f32.mxu0 0.0
        %519 = vmatmul.mubr.f32.gmra.mxu0 %v260
        %v520 = vpop.f32.mrf.mxu0
        %v521 = vadd.f32 %v367, %v520
        %v522 = vpop.f32.mrf.mxu0
        %v523 = vadd.f32 %v367, %v522
        %524 = vmatprep.mubr.f32.mxu0 0.0
        %525 = vmatmul.mubr.f32.gmra.mxu0 %v261
        %v526 = vpop.f32.mrf.mxu0
        %v527 = vadd.f32 %v372, %v526
        %v528 = vpop.f32.mrf.mxu0
        %v529 = vadd.f32 %v372, %v528
        %530 = vmatprep.mubr.f32.mxu0 0.0
        %531 = vmatmul.mubr.f32.gmra.mxu0 %v262
        %v532 = vpop.f32.mrf.mxu0
        %v533 = vadd.f32 %v377, %v532
        %v534 = vpop.f32.mrf.mxu0
        %v535 = vadd.f32 %v377, %v534
        %536 = vmatprep.mubr.f32.mxu0 0.0
        %537 = vmatmul.mubr.f32.gmra.mxu0 %v263
        %v538 = vpop.f32.mrf.mxu0
        %v539 = vadd.f32 %v382, %v538
        %v540 = vpop.f32.mrf.mxu0
        %v541 = vadd.f32 %v382, %v540
        %542 = vmatprep.mubr.f32.mxu0 0.0
        %543 = vmatmul.mubr.f32.gmra.mxu0 %v264
        %v544 = vpop.f32.mrf.mxu0
        %v545 = vadd.f32 %v387, %v544
        %v546 = vpop.f32.mrf.mxu0
        %v547 = vadd.f32 %v387, %v546
        %548 = vmatprep.mubr.f32.mxu0 0.0
        %549 = vmatmul.mubr.f32.gmra.mxu0 %v265
        %v550 = vpop.f32.mrf.mxu0
        %v551 = vadd.f32 %v392, %v550
        %v552 = vpop.f32.mrf.mxu0
        %v553 = vadd.f32 %v392, %v552
        %554 = vdwg.mxu0
        %s555 = sld [smem:[#allocation2 + %s26]]
        %v556 = vstv %s555
        %v557 = vmul.f32 %v461, %v556
        %v558 = vmul.f32 %v463, %v556
        %v559 = vmul.f32 %v467, %v556
        %v560 = vmul.f32 %v469, %v556
        %v561 = vmul.f32 %v473, %v556
        %v562 = vmul.f32 %v475, %v556
        %v563 = vmul.f32 %v479, %v556
        %v564 = vmul.f32 %v481, %v556
        %v565 = vmul.f32 %v485, %v556
        %v566 = vmul.f32 %v487, %v556
        %v567 = vmul.f32 %v491, %v556
        %v568 = vmul.f32 %v493, %v556
        %v569 = vmul.f32 %v497, %v556
        %v570 = vmul.f32 %v499, %v556
        %v571 = vmul.f32 %v503, %v556
        %v572 = vmul.f32 %v505, %v556
        %v573 = vmul.f32 %v509, %v556
        %v574 = vmul.f32 %v511, %v556
        %v575 = vmul.f32 %v515, %v556
        %v576 = vmul.f32 %v517, %v556
        %v577 = vmul.f32 %v521, %v556
        %v578 = vmul.f32 %v523, %v556
        %v579 = vmul.f32 %v527, %v556
        %v580 = vmul.f32 %v529, %v556
        %v581 = vmul.f32 %v533, %v556
        %v582 = vmul.f32 %v535, %v556
        %v583 = vmul.f32 %v539, %v556
        %v584 = vmul.f32 %v541, %v556
        %v585 = vmul.f32 %v545, %v556
        %v586 = vmul.f32 %v547, %v556
        %v587 = vmul.f32 %v551, %v556
        %v588 = vmul.f32 %v553, %v556
        %v589 = vmax.f32 %v557, 0.0
        %v590 = vmax.f32 %v558, 0.0
        %v591 = vmax.f32 %v559, 0.0
        %v592 = vmax.f32 %v560, 0.0
        %v593 = vmax.f32 %v561, 0.0
        %v594 = vmax.f32 %v562, 0.0
        %v595 = vmax.f32 %v563, 0.0
        %v596 = vmax.f32 %v564, 0.0
        %v597 = vmax.f32 %v565, 0.0
        %v598 = vmax.f32 %v566, 0.0
        %v599 = vmax.f32 %v567, 0.0
        %v600 = vmax.f32 %v568, 0.0
        %v601 = vmax.f32 %v569, 0.0
        %v602 = vmax.f32 %v570, 0.0
        %v603 = vmax.f32 %v571, 0.0
        %v604 = vmax.f32 %v572, 0.0
        %v605 = vmax.f32 %v573, 0.0
        %v606 = vmax.f32 %v574, 0.0
        %v607 = vmax.f32 %v575, 0.0
        %v608 = vmax.f32 %v576, 0.0
        %v609 = vmax.f32 %v577, 0.0
        %v610 = vmax.f32 %v578, 0.0
        %v611 = vmax.f32 %v579, 0.0
        %v612 = vmax.f32 %v580, 0.0
        %v613 = vmax.f32 %v581, 0.0
        %v614 = vmax.f32 %v582, 0.0
        %v615 = vmax.f32 %v583, 0.0
        %v616 = vmax.f32 %v584, 0.0
        %v617 = vmax.f32 %v585, 0.0
        %v618 = vmax.f32 %v586, 0.0
        %v619 = vmax.f32 %v587, 0.0
        %v620 = vmax.f32 %v588, 0.0
        %621 = vst [vmem:[%s247] sm:$0xff] %v589
        %622 = vst [vmem:[%s247 + $0x8] sm:$0xff] %v590
        %623 = vst [vmem:[%s247 + $0x10] sm:$0xff] %v591
        %624 = vst [vmem:[%s247 + $0x18] sm:$0xff] %v592
        %625 = vst [vmem:[%s247 + $0x20] sm:$0xff] %v593
        %626 = vst [vmem:[%s247 + $0x28] sm:$0xff] %v594
        %627 = vst [vmem:[%s247 + $0x30] sm:$0xff] %v595
        %628 = vst [vmem:[%s247 + $0x38] sm:$0xff] %v596
        %629 = vst [vmem:[%s247 + $0x40] sm:$0xff] %v597
        %630 = vst [vmem:[%s247 + $0x48] sm:$0xff] %v598
        %631 = vst [vmem:[%s247 + $0x50] sm:$0xff] %v599
        %632 = vst [vmem:[%s247 + $0x58] sm:$0xff] %v600
        %633 = vst [vmem:[%s247 + $0x60] sm:$0xff] %v601
        %634 = vst [vmem:[%s247 + $0x68] sm:$0xff] %v602
        %635 = vst [vmem:[%s247 + $0x70] sm:$0xff] %v603
        %636 = vst [vmem:[%s247 + $0x78] sm:$0xff] %v604
        %637 = vst [vmem:[%s247 + $0x80] sm:$0xff] %v605
        %638 = vst [vmem:[%s247 + $0x88] sm:$0xff] %v606
        %639 = vst [vmem:[%s247 + $0x90] sm:$0xff] %v607
        %640 = vst [vmem:[%s247 + $0x98] sm:$0xff] %v608
        %641 = vst [vmem:[%s247 + $0xa0] sm:$0xff] %v609
        %642 = vst [vmem:[%s247 + $0xa8] sm:$0xff] %v610
        %643 = vst [vmem:[%s247 + $0xb0] sm:$0xff] %v611
        %644 = vst [vmem:[%s247 + $0xb8] sm:$0xff] %v612
        %645 = vst [vmem:[%s247 + $0xc0] sm:$0xff] %v613
        %646 = vst [vmem:[%s247 + $0xc8] sm:$0xff] %v614
        %647 = vst [vmem:[%s247 + $0xd0] sm:$0xff] %v615
        %648 = vst [vmem:[%s247 + $0xd8] sm:$0xff] %v616
        %649 = vst [vmem:[%s247 + $0xe0] sm:$0xff] %v617
        %650 = vst [vmem:[%s247 + $0xe8] sm:$0xff] %v618
        %651 = vst [vmem:[%s247 + $0xf0] sm:$0xff] %v619
        %652 = vst [vmem:[%s247 + $0xf8] sm:$0xff] %v620
        %s653 = sand.u32 %s135, 1
        %s654 = scalar_lea.sflag [#allocation4], %s653
        %s655 = sand.u32 %s135, 1
        %s656 = smul.addr %s655, 256
        %s657 = scalar_lea.vmem [#allocation7], %s656
        // Predicated region
        $region45: #{tpu_custom_call.1} parent=35 // pred_check
          %p658 = pneg %p145
        $region46: #{tpu_custom_call.1} parent=35 // pred_check_branch
          %660 = sbr.rel (%p658) target = $region48
        $region47: #{tpu_custom_call.1} parent=35 // pred_region
          %s661 = smul.u32 2, %s27
          %s663 = ssub.s32 4096, 4096
          %664 = vsyncadd %s654, %s663
          %s665 = smul.addr %s26, 32
          %s666 = sadd.s32 %s661, %s665
          %s667 = smul.addr %s666, 128
          %s668 = scalar_lea.hbm %s4, %s667
          %s669 = sshll.u32 %s657, 4
          %s670 = int_to_ptr.vmem [resolvable:$true] %s669
          %675 = dma.vmem_to_hbm [thread:$0]  %s670, 4096, %s668, %s654, 256, 256, 16
        $region48: #{tpu_custom_call.1} parent=35 // pred_fallthru
          _
      $region36: #{tpu_custom_call.1} parent=5 // pred_fallthru
        _
      %p676 = scmp.le.s32.totalorder 2, %s17
      // Predicated region
      $region49: #{tpu_custom_call.1} parent=5 // pred_check
        %p677 = pneg %p676
      $region50: #{tpu_custom_call.1} parent=5 // pred_check_branch
        %679 = sbr.rel (%p677) target = $region52
      $region51: #{tpu_custom_call.1} parent=5 // pred_region
        %s680 = ssub.s32 %s17, 2
        // Predicated region
        $region53: #{tpu_custom_call.1} parent=51 // pred_check
          %p681 = pneg %p151
        $region54: #{tpu_custom_call.1} parent=51 // pred_check_branch
          %683 = sbr.rel (%p681) target = $region56
        $region55: #{tpu_custom_call.1} parent=51 // pred_region
          %s684 = sand.u32 %s136, 1
          %s685 = scalar_lea.sflag [#allocation4], %s684
          %s686 = sand.u32 %s136, 1
          %s687 = smul.addr %s686, 256
          %s688 = scalar_lea.vmem [#allocation7], %s687
          %689 = dma.done %s685, 4096
        $region56: #{tpu_custom_call.1} parent=51 // pred_fallthru
          _
      $region52: #{tpu_custom_call.1} parent=5 // pred_fallthru
        _
    $region6: #{tpu_custom_call.1} parent=1 // loop_footer
      %s21 = sadd.s32 1, %s17
    $region7: #{tpu_custom_call.1} parent=1 // loop_footer_branch
      %16 = sbr.rel target = $region3
    $region8: #{tpu_custom_call.1} parent=1 // loop_exit
      _
    %690 = vsyncpa [#allocation3], 1
    %s691 = scalar_lea.sflag [#allocation3], 1
    %692 = vsyncpa %s691, 1
    %693 = vsyncpa [#allocation4], 1
    %s694 = scalar_lea.sflag [#allocation4], 1
    %695 = vsyncpa %s694, 1
    %696 = vsyncpa [#allocation5], 1
    %s697 = scalar_lea.sflag [#allocation5], 1
    %698 = vsyncpa %s697, 1

</llo_original>
